<compile_context>
chip_gen: v6e
topology: v6e:2x2x1
jax: 0.10.0
libtpu: 0.0.40
codegen_flags: <defaults>
</compile_context>

<pallas_src>
import jax
import jax.numpy as jnp
from jax import lax
from jax.experimental import pallas as pl
from jax.experimental.pallas import tpu as pltpu

IN_FEATURES = 128
OUT_FEATURES = 1


def _decoder_kernel(x_ref, w_ref, b_ref, o_ref):
    # x_ref: (tm, 128) VMEM   w_ref: (1, 128) VMEM   b_ref: (1,) SMEM
    # o_ref: (1, 1, tm) VMEM  -- lane-dense transposed output slab.
    y = lax.dot_general(
        w_ref[...], x_ref[...],
        dimension_numbers=(((1,), (1,)), ((), ())),
        preferred_element_type=jnp.float32,
    )                                   # (1, tm), f32 accumulate
    y = jnp.tanh(y + b_ref[0])          # dropout: identity (eval mode)
    o_ref[...] = y.reshape(o_ref.shape).astype(o_ref.dtype)


def decoder_forward(x, weight, bias, *, tm=1024):
    """x: (..., 128); weight: (1, 128) (PyTorch layout); bias: (1,)."""
    orig_shape = x.shape
    assert orig_shape[-1] == IN_FEATURES
    x2 = x.reshape(-1, IN_FEATURES)
    n = x2.shape[0]

    # Lane-dense output requires tm % 128 == 0; clamp so tiny inputs don't
    # over-pad.  (Sweep 512/1024/2048 for large N; 1024 f32 is 0.5 MiB/buffer,
    # safe for v5e/v6e/v7x scoped-VMEM defaults.)
    tm = max(128, (int(tm) // 128) * 128)
    tm = min(tm, pl.cdiv(n, 128) * 128)

    n_blocks = pl.cdiv(n, tm)
    n_pad = n_blocks * tm
    if n_pad != n:
        x2 = jnp.pad(x2, ((0, n_pad - n), (0, 0)))

    w = weight.astype(jnp.float32)                        # (1, 128), no transpose
    b = bias.reshape(OUT_FEATURES).astype(jnp.float32)    # (1,) scalar -> SMEM

    out_t = pl.pallas_call(
        _decoder_kernel,
        out_shape=jax.ShapeDtypeStruct((n_blocks, 1, tm), x2.dtype),
        grid=(n_blocks,),
        in_specs=[
            pl.BlockSpec((tm, IN_FEATURES), lambda i: (i, 0)),       # x tile
            pl.BlockSpec((1, IN_FEATURES), lambda i: (0, 0)),        # weight (resident)
            pl.BlockSpec(memory_space=pltpu.MemorySpace.SMEM),       # bias scalar
        ],
        out_specs=pl.BlockSpec((1, 1, tm), lambda i: (i, 0, 0)),
        compiler_params=pltpu.CompilerParams(
            dimension_semantics=("parallel",)),
    )(x2, w, b)

    out = out_t.reshape(n_pad)[:n]
    return out.reshape(*orig_shape[:-1], OUT_FEATURES)


if __name__ == "__main__":
    key = jax.random.PRNGKey(0)
    kx, kw, kb, kx2 = jax.random.split(key, 4)

    # Deterministic parameter init (kaiming-uniform-ish bound like PyTorch Linear).
    bound = 1.0 / (IN_FEATURES ** 0.5)
    weight = jax.random.uniform(kw, (OUT_FEATURES, IN_FEATURES),
                                minval=-bound, maxval=bound, dtype=jnp.float32)
    bias = jax.random.uniform(kb, (OUT_FEATURES,),
                              minval=-bound, maxval=bound, dtype=jnp.float32)

    # Small shape consistent with the module: batch=2, seq=8, hidden=128.
    x = jax.random.normal(kx, (2, 8, IN_FEATURES), dtype=jnp.float32)
    y = decoder_forward(x, weight, bias)
    jax.block_until_ready(y)
    y_ref = jnp.tanh(x @ weight.T + bias)
    assert y.shape == (2, 8, OUT_FEATURES)
    assert jnp.allclose(y, y_ref, atol=1e-5), "mismatch vs reference (small)"

    # Ragged row count exercising the multi-block parallel grid + tail padding.
    x_ragged = jax.random.normal(kx2, (3, 50, IN_FEATURES), dtype=jnp.float32)
    y2 = decoder_forward(x_ragged, weight, bias, tm=128)
    jax.block_until_ready(y2)
    y2_ref = jnp.tanh(x_ragged @ weight.T + bias)
    assert y2.shape == (3, 50, OUT_FEATURES)
    assert jnp.allclose(y2, y2_ref, atol=1e-5), "mismatch vs reference (ragged)"

    print("KERNEL_OK")
</pallas_src>

<mosaic_0001>
module attributes {stable_mosaic.version = 11 : i64} {
  func.func @_decoder_kernel(%arg0: i32, %arg1: memref<128x128xf32, #tpu.memory_space<vmem>>, %arg2: memref<1x128xf32, #tpu.memory_space<vmem>>, %arg3: memref<1xf32, #tpu.memory_space<smem>>, %arg4: memref<1x1x128xf32, #tpu.memory_space<vmem>>) attributes {dimension_semantics = [#tpu.dimension_semantics<parallel>], iteration_bounds = array<i64: 1>, scalar_prefetch = 0 : i64, scratch_operands = 0 : i64, tpu.core_type = #tpu.core_type<tc>, window_params = [{transform_indices = @transform_0, window_bounds = array<i64: 128, 128>}, {pipeline_mode = #tpu.pipeline_mode<synchronous>, transform_indices = @transform_1, window_bounds = array<i64: 1, 128>}, {transform_indices = @transform_2, window_bounds = array<i64: 1>}, {transform_indices = @transform_3, window_bounds = array<i64: 1, 1, 128>}]} {
    %c0 = arith.constant 0 : index
    %c0_0 = arith.constant 0 : index
    %0 = vector.load %arg2[%c0, %c0_0] : memref<1x128xf32, #tpu.memory_space<vmem>>, vector<1x128xf32>
    %c0_1 = arith.constant 0 : index
    %c0_2 = arith.constant 0 : index
    %1 = vector.load %arg1[%c0_1, %c0_2] : memref<128x128xf32, #tpu.memory_space<vmem>>, vector<128x128xf32>
    %cst = arith.constant dense<0.000000e+00> : vector<1x128xf32>
    %2 = tpu.matmul %0, %1, %cst {dimension_numbers = #tpu.dot_dimension_numbers<[1], [1], [0], [0], [0, 0, 1, 0], [], []>} : vector<1x128xf32>, vector<128x128xf32>, vector<1x128xf32> -> vector<1x128xf32>
    %c0_3 = arith.constant 0 : index
    %3 = memref.load %arg3[%c0_3] : memref<1xf32, #tpu.memory_space<smem>>
    %4 = vector.broadcast %3 : f32 to vector<1x128xf32>
    %5 = arith.addf %2, %4 : vector<1x128xf32>
    %6 = math.tanh %5 : vector<1x128xf32>
    %7 = vector.shape_cast %6 : vector<1x128xf32> to vector<1x1x128xf32>
    %c0_4 = arith.constant 0 : index
    %c0_5 = arith.constant 0 : index
    %c0_6 = arith.constant 0 : index
    %8 = vector.load %arg4[%c0_4, %c0_5, %c0_6] : memref<1x1x128xf32, #tpu.memory_space<vmem>>, vector<1x1x128xf32>
    tpu.vector_store %arg4[%c0_4, %c0_5, %c0_6], %7 {strides = array<i32>} : memref<1x1x128xf32, #tpu.memory_space<vmem>>, vector<1x1x128xf32>,
    return
  }
  func.func @transform_0(%arg0: i32) -> (i32, i32) {
    %c0_i32 = arith.constant 0 : i32
    %c0_i32_0 = arith.constant 0 : i32
    return %arg0, %c0_i32 : i32, i32
  }
  func.func @transform_1(%arg0: i32) -> (i32, i32) {
    %c0_i32 = arith.constant 0 : i32
    %c0_i32_0 = arith.constant 0 : i32
    %c0_i32_1 = arith.constant 0 : i32
    return %c0_i32, %c0_i32_0 : i32, i32
  }
  func.func @transform_2(%arg0: i32) -> i32 {
    %c0_i32 = arith.constant 0 : i32
    %c0_i32_0 = arith.constant 0 : i32
    return %c0_i32 : i32
  }
  func.func @transform_3(%arg0: i32) -> (i32, i32, i32) {
    %c0_i32 = arith.constant 0 : i32
    %c0_i32_0 = arith.constant 0 : i32
    %c0_i32_1 = arith.constant 0 : i32
    return %arg0, %c0_i32, %c0_i32_0 : i32, i32, i32
  }
}

</mosaic_0001>

<llo_original>
// kernel: tpu_custom_call.1
$region0: #{tpu_custom_call.1}
  #allocation0 [shape = 'u32[]', space=smem, size = 0x4, offset = 0x4, fixed_abs, tag = 'smem constant byte address 0x4 - core index']
  #allocation1 [shape = 'u32[144,128]{1,0:T(1,128)}', space=vmem, size = 0x12000, scoped, tag = 'internal scratch']
  #allocation2 [shape = 'f32[1]{0:T(128)S(6)}', space=smem, size = 0x200, scoped, tag = 'scoped memory for tpu_custom_call.1']
  %s0 = inlined_call_operand.hbm [shape: f32[128,128], index: 0, kind: input, shape index: {}]
  %s1 = inlined_call_operand.vmem [shape: f32[1,128], index: 1, kind: input, shape index: {}]
  %s2 = inlined_call_operand.<no memory space> [shape: f32[1], index: 2, kind: input, shape index: {}]
  %s3 = inlined_call_operand.hbm [shape: f32[1,1,128], index: 3, kind: output, shape index: {}]
  %s4 = sld [smem:[#allocation0]]
  $region26: #{tpu_custom_call.1} parent=0
    _
  %s6 = ssub.s32 1, %s4
  %s7 = scalar_select 0, %s6, %s4
  %8 = sst [smem:[#allocation2]] %s2
  $region1: #{tpu_custom_call.1} parent=0
    #allocation3 [shape = 'u8[65536]{0}', space=vmem, size = 0x10000, scoped, tag = 'input window, operand 0, single buffered']
    #allocation4 [shape = 's32[1]{0}', space=sflag, size = 0x4, scoped, tag = 'scoped memory for tpu_custom_call.1']
    #allocation5 [shape = 's32[1]{0}', space=sflag, size = 0x4, scoped, tag = 'scoped memory for tpu_custom_call.1']
    #allocation6 [shape = 'u8[512]{0}', space=vmem, size = 0x400, scoped, tag = 'output window, operand 0, single buffered']
    %9 = vsyncpa [#allocation4], 0
    %10 = vsyncpa [#allocation5], 0
    // Predicated region
    $region2: #{tpu_custom_call.1} parent=1 // pred_check
      _
    $region3: #{tpu_custom_call.1} parent=1 // pred_check_branch
      %12 = sbr.rel (0) target = $region5
    $region4: #{tpu_custom_call.1} parent=1 // pred_region
      %s14 = ssub.s32 2048, 2048
      %15 = vsyncadd [#allocation4], %s14
      %s16 = sshll.u32 [#allocation3], 4
      %s17 = int_to_ptr.vmem [resolvable:$true] %s16
      %22 = dma.hbm_to_vmem [thread:$0]  %s0, 2048, %s17, [#allocation4], 128, 128, 8
    $region5: #{tpu_custom_call.1} parent=1 // pred_fallthru
      _
    // Predicated region
    $region6: #{tpu_custom_call.1} parent=1 // pred_check
      _
    $region7: #{tpu_custom_call.1} parent=1 // pred_check_branch
      %24 = sbr.rel (0) target = $region9
    $region8: #{tpu_custom_call.1} parent=1 // pred_region
      _
    $region9: #{tpu_custom_call.1} parent=1 // pred_fallthru
      _
    // Predicated region
    $region10: #{tpu_custom_call.1} parent=1 // pred_check
      _
    $region11: #{tpu_custom_call.1} parent=1 // pred_check_branch
      %26 = sbr.rel (0) target = $region13
    $region12: #{tpu_custom_call.1} parent=1 // pred_region
      _
    $region13: #{tpu_custom_call.1} parent=1 // pred_fallthru
      _
    // Predicated region
    $region14: #{tpu_custom_call.1} parent=1 // pred_check
      _
    $region15: #{tpu_custom_call.1} parent=1 // pred_check_branch
      %28 = sbr.rel (0) target = $region17
    $region16: #{tpu_custom_call.1} parent=1 // pred_region
      %29 = dma.done [#allocation4], 2048
    $region17: #{tpu_custom_call.1} parent=1 // pred_fallthru
      _
    %v30 = vld [vmem:[%s1] sm:$0x1]
    %v31 = vld [vmem:[#allocation3] sm:$0xff]
    %v32 = vld [vmem:[#allocation3 + $0x8] sm:$0xff]
    %v33 = vld [vmem:[#allocation3 + $0x10] sm:$0xff]
    %v34 = vld [vmem:[#allocation3 + $0x18] sm:$0xff]
    %v35 = vld [vmem:[#allocation3 + $0x20] sm:$0xff]
    %v36 = vld [vmem:[#allocation3 + $0x28] sm:$0xff]
    %v37 = vld [vmem:[#allocation3 + $0x30] sm:$0xff]
    %v38 = vld [vmem:[#allocation3 + $0x38] sm:$0xff]
    %v39 = vld [vmem:[#allocation3 + $0x40] sm:$0xff]
    %v40 = vld [vmem:[#allocation3 + $0x48] sm:$0xff]
    %v41 = vld [vmem:[#allocation3 + $0x50] sm:$0xff]
    %v42 = vld [vmem:[#allocation3 + $0x58] sm:$0xff]
    %v43 = vld [vmem:[#allocation3 + $0x60] sm:$0xff]
    %v44 = vld [vmem:[#allocation3 + $0x68] sm:$0xff]
    %v45 = vld [vmem:[#allocation3 + $0x70] sm:$0xff]
    %v46 = vld [vmem:[#allocation3 + $0x78] sm:$0xff]
    %s47 = sld [smem:[#allocation2]]
    %v48 = vstv %s47
    %49 = vmatprep.subr.mxu0 0.0
    %50 = vmatpush1.xpose.msra.mxu0 %v46
    %51 = vmatprep.subr.mxu0 0.0
    %52 = vmatpush1.xpose.msra.mxu0 %v45
    %53 = vmatprep.subr.mxu0 0.0
    %54 = vmatpush1.xpose.msra.mxu0 %v44
    %55 = vmatprep.subr.mxu0 0.0
    %56 = vmatpush1.xpose.msra.mxu0 %v43
    %57 = vmatprep.subr.mxu0 0.0
    %58 = vmatpush1.xpose.msra.mxu0 %v42
    %59 = vmatprep.subr.mxu0 0.0
    %60 = vmatpush1.xpose.msra.mxu0 %v41
    %61 = vmatprep.subr.mxu0 0.0
    %62 = vmatpush1.xpose.msra.mxu0 %v40
    %63 = vmatprep.subr.mxu0 0.0
    %64 = vmatpush1.xpose.msra.mxu0 %v39
    %65 = vmatprep.subr.mxu0 0.0
    %66 = vmatpush1.xpose.msra.mxu0 %v38
    %67 = vmatprep.subr.mxu0 0.0
    %68 = vmatpush1.xpose.msra.mxu0 %v37
    %69 = vmatprep.subr.mxu0 0.0
    %70 = vmatpush1.xpose.msra.mxu0 %v36
    %71 = vmatprep.subr.mxu0 0.0
    %72 = vmatpush1.xpose.msra.mxu0 %v35
    %73 = vmatprep.subr.mxu0 0.0
    %74 = vmatpush1.xpose.msra.mxu0 %v34
    %75 = vmatprep.subr.mxu0 0.0
    %76 = vmatpush1.xpose.msra.mxu0 %v33
    %77 = vmatprep.subr.mxu0 0.0
    %78 = vmatpush1.xpose.msra.mxu0 %v32
    %79 = vmatprep.subr.mxu0 0.0
    %80 = vmatpush1.xpose.msra.mxu0 %v31
    %81 = vmatprep.subr.mxu0 0.0
    %82 = vmatpush2.xpose.msra.mxu0 0.0
    %83 = vmatprep.subr.mxu0 0.0
    %84 = vmatpush2.xpose.msra.mxu0 0.0
    %85 = vmatprep.subr.mxu0 0.0
    %86 = vmatpush2.xpose.msra.mxu0 0.0
    %87 = vmatprep.subr.mxu0 0.0
    %88 = vmatpush2.xpose.msra.mxu0 0.0
    %89 = vmatprep.subr.mxu0 0.0
    %90 = vmatpush2.xpose.msra.mxu0 0.0
    %91 = vmatprep.subr.mxu0 0.0
    %92 = vmatpush2.xpose.msra.mxu0 0.0
    %93 = vmatprep.subr.mxu0 0.0
    %94 = vmatpush2.xpose.msra.mxu0 0.0
    %95 = vmatprep.subr.mxu0 0.0
    %96 = vmatpush2.xpose.msra.mxu0 0.0
    %97 = vmatprep.subr.mxu0 0.0
    %98 = vmatpush2.xpose.msra.mxu0 0.0
    %99 = vmatprep.subr.mxu0 0.0
    %100 = vmatpush2.xpose.msra.mxu0 0.0
    %101 = vmatprep.subr.mxu0 0.0
    %102 = vmatpush2.xpose.msra.mxu0 0.0
    %103 = vmatprep.subr.mxu0 0.0
    %104 = vmatpush2.xpose.msra.mxu0 0.0
    %105 = vmatprep.subr.mxu0 0.0
    %106 = vmatpush2.xpose.msra.mxu0 0.0
    %107 = vmatprep.subr.mxu0 0.0
    %108 = vmatpush2.xpose.msra.mxu0 0.0
    %109 = vmatprep.subr.mxu0 0.0
    %110 = vmatpush2.xpose.msra.mxu0 0.0
    %111 = vmatprep.subr.mxu0 0.0
    %112 = vmatpush2.xpose.msra.mxu0 0.0
    %113 = vmatprep.mubr.f32.mxu0 0.0
    %114 = vmatmul.mubr.f32.gmra.mxu0 %v30
    %v115 = vpop.f32.mrf.mxu0
    %v116 = vadd.f32 %v48, %v115
    %v117 = vpop.f32.mrf.mxu0
    %118 = vdwg.mxu0
    %v119 = vtanh.pop %v116
    %120 = vst [vmem:[#allocation6] sm:$0x1] %v119
    // Predicated region
    $region18: #{tpu_custom_call.1} parent=1 // pred_check
      _
    $region19: #{tpu_custom_call.1} parent=1 // pred_check_branch
      %122 = sbr.rel (0) target = $region21
    $region20: #{tpu_custom_call.1} parent=1 // pred_region
      %s124 = ssub.s32 16, 16
      %125 = vsyncadd [#allocation5], %s124
      %s127 = sshll.u32 [#allocation6], 4
      %s128 = int_to_ptr.vmem [resolvable:$true] %s127
      %130 = dma.vmem_to_hbm [thread:$0]  %s128, 16, %s3, [#allocation5]
    $region21: #{tpu_custom_call.1} parent=1 // pred_fallthru
      _
    // Predicated region
    $region22: #{tpu_custom_call.1} parent=1 // pred_check
      _
    $region23: #{tpu_custom_call.1} parent=1 // pred_check_branch
      %132 = sbr.rel (0) target = $region25
    $region24: #{tpu_custom_call.1} parent=1 // pred_region
      %133 = dma.done [#allocation5], 16
    $region25: #{tpu_custom_call.1} parent=1 // pred_fallthru
      _
    %134 = vsyncpa [#allocation4], 1
    %135 = vsyncpa [#allocation5], 1

</llo_original>
